<compile_context>
chip_gen: v7x
topology: tpu7x:2x2x1
jax: 0.10.0
libtpu: 0.0.40
codegen_flags: <defaults>
</compile_context>

<pallas_src>
import functools

import jax
import jax.numpy as jnp
from jax.experimental import pallas as pl
from jax.experimental.pallas import tpu as pltpu

_LANES = 512          # lane-dense last dim (multiple of 128)
_BLOCK_ROWS = 512     # 512 x 512 f32 = 1 MiB per block buffer
_SUBLANES = 8


def _drop_path_kernel(threshold, scale,
                      xr_ref, xi_ref, bits_ref, or_ref, oi_ref):
    # Bernoulli(keep_prob) via a signed int32 threshold compare; the same
    # mask multiplies both the real and imaginary planes of each element.
    keep = bits_ref[...] < jnp.int32(threshold)
    s = jnp.float32(scale)
    zero = jnp.float32(0.0)
    or_ref[...] = jnp.where(keep, xr_ref[...] * s, zero)
    oi_ref[...] = jnp.where(keep, xi_ref[...] * s, zero)


def complex_drop_path(x, *, p=0.0, scale_by_keep=True, training=True,
                      key=None, min_pallas_elems=0):
    """JAX/Pallas equivalent of ComplexDropPath.forward.

    x: complex64 array of any shape (e.g. NCHW). Returns same shape/dtype.
    """
    if p == 0.0 or not training:
        return x
    keep_prob = 1.0 - float(p)
    if keep_prob <= 0.0:
        # Everything dropped; PyTorch skips the 1/keep_prob scale in this case.
        return jnp.zeros_like(x)
    if key is None:
        key = jax.random.PRNGKey(0)

    scale = (1.0 / keep_prob) if scale_by_keep else 1.0

    # Tiny tensors: per-step pallas_call overhead dominates -> pure JAX path.
    # Default threshold is 0 so the demo below always exercises the kernel.
    if int(x.size) < int(min_pallas_elems):
        keep = jax.random.bernoulli(key, keep_prob, x.shape)
        return jnp.where(keep, x * scale, 0).astype(x.dtype)

    orig_shape = x.shape
    n_elems = int(x.size)          # number of complex elements

    xr = jnp.real(x).astype(jnp.float32).reshape(-1)
    xi = jnp.imag(x).astype(jnp.float32).reshape(-1)

    # Pad to a full (8, 512) tile multiple, then up to a whole number of
    # (block_rows, 512) blocks so every grid step is a full unmasked block.
    tile_elems = _SUBLANES * _LANES
    rows = (-(-n_elems // tile_elems) * tile_elems) // _LANES
    block_rows = min(_BLOCK_ROWS, rows)
    rows = -(-rows // block_rows) * block_rows
    padded = rows * _LANES
    pad = padded - n_elems
    if pad:
        xr = jnp.pad(xr, (0, pad))
        xi = jnp.pad(xi, (0, pad))

    xr2 = xr.reshape(rows, _LANES)
    xi2 = xi.reshape(rows, _LANES)

    # One random word per complex element (shared by re/im), drawn with the
    # standard JAX PRNG outside the kernel and bitcast to int32 so the kernel
    # only needs a signed compare.
    bits = jax.random.bits(key, (rows, _LANES), dtype=jnp.uint32)
    bits = jax.lax.bitcast_convert_type(bits, jnp.int32)

    # keep  <=>  bits_i32 < keep_prob * 2**32 - 2**31  (signed compare).
    thr_u = int(round(keep_prob * (2.0 ** 32)))
    threshold = max(-(2 ** 31), min(thr_u - 2 ** 31, 2 ** 31 - 1))

    grid = (rows // block_rows,)
    spec = pl.BlockSpec((block_rows, _LANES), lambda i: (i, 0))

    kernel = functools.partial(_drop_path_kernel, threshold, scale)

    out_r, out_i = pl.pallas_call(
        kernel,
        out_shape=(
            jax.ShapeDtypeStruct((rows, _LANES), jnp.float32),
            jax.ShapeDtypeStruct((rows, _LANES), jnp.float32),
        ),
        grid=grid,
        in_specs=[spec, spec, spec],
        out_specs=(spec, spec),
        compiler_params=pltpu.CompilerParams(
            dimension_semantics=("parallel",)),
    )(xr2, xi2, bits)

    out_r = out_r.reshape(-1)[:n_elems].reshape(orig_shape)
    out_i = out_i.reshape(-1)[:n_elems].reshape(orig_shape)
    return jax.lax.complex(out_r, out_i).astype(x.dtype)


if __name__ == "__main__":
    root = jax.random.PRNGKey(0)
    kr, ki, kmask = jax.random.split(root, 3)

    # NCHW complex input, consistent with the PyTorch module's usage.
    shape = (2, 4, 16, 16)
    x = jax.lax.complex(
        jax.random.normal(kr, shape, dtype=jnp.float32),
        jax.random.normal(ki, shape, dtype=jnp.float32)).astype(jnp.complex64)

    p = 0.25
    keep_prob = 1.0 - p
    y = complex_drop_path(x, p=p, scale_by_keep=True, training=True, key=kmask)
    y = jax.block_until_ready(y)

    # Drop-path semantics: every complex element is either exactly zeroed or
    # has BOTH its real and imaginary parts scaled by 1/keep_prob.
    dropped = (y == 0)
    err_kept = jnp.where(dropped, jnp.float32(0.0), jnp.abs(y - x / keep_prob))
    ok_vals = bool(jnp.max(err_kept) < 1e-4)

    frac_kept = 1.0 - jnp.mean(dropped.astype(jnp.float32))
    ok_frac = bool(jnp.abs(frac_kept - keep_prob) < 0.1)

    # Eval mode / p == 0 are the identity.
    y_eval = jax.block_until_ready(complex_drop_path(x, p=p, training=False))
    ok_eval = bool(jnp.allclose(y_eval, x))
    y_p0 = jax.block_until_ready(complex_drop_path(x, p=0.0, training=True))
    ok_p0 = bool(jnp.allclose(y_p0, x))

    assert ok_vals and ok_frac and ok_eval and ok_p0
    print("KERNEL_OK")
</pallas_src>

<mosaic_0001>
module attributes {stable_mosaic.version = 11 : i64} {
  func.func @_drop_path_kernel(%arg0: i32, %arg1: memref<8x512xf32, #tpu.memory_space<vmem>>, %arg2: memref<8x512xf32, #tpu.memory_space<vmem>>, %arg3: memref<8x512xi32, #tpu.memory_space<vmem>>, %arg4: memref<8x512xf32, #tpu.memory_space<vmem>>, %arg5: memref<8x512xf32, #tpu.memory_space<vmem>>) attributes {dimension_semantics = [#tpu.dimension_semantics<parallel>], iteration_bounds = array<i64: 1>, scalar_prefetch = 0 : i64, scratch_operands = 0 : i64, tpu.core_type = #tpu.core_type<tc>, window_params = [{transform_indices = @transform_0, window_bounds = array<i64: 8, 512>}, {transform_indices = @transform_1, window_bounds = array<i64: 8, 512>}, {transform_indices = @transform_2, window_bounds = array<i64: 8, 512>}, {transform_indices = @transform_3, window_bounds = array<i64: 8, 512>}, {transform_indices = @transform_4, window_bounds = array<i64: 8, 512>}]} {
    %c0 = arith.constant 0 : index
    %c0_0 = arith.constant 0 : index
    %0 = vector.load %arg3[%c0, %c0_0] : memref<8x512xi32, #tpu.memory_space<vmem>>, vector<8x512xi32>
    %c1073741824_i32 = arith.constant 1073741824 : i32
    %1 = vector.broadcast %c1073741824_i32 : i32 to vector<8x512xi32>
    %2 = arith.cmpi slt, %0, %1 : vector<8x512xi32>
    %c0_1 = arith.constant 0 : index
    %c0_2 = arith.constant 0 : index
    %3 = vector.load %arg1[%c0_1, %c0_2] : memref<8x512xf32, #tpu.memory_space<vmem>>, vector<8x512xf32>
    %cst = arith.constant 1.33333337 : f32
    %4 = vector.broadcast %cst : f32 to vector<8x512xf32>
    %5 = arith.mulf %3, %4 : vector<8x512xf32>
    %cst_3 = arith.constant 0.000000e+00 : f32
    %6 = vector.broadcast %cst_3 : f32 to vector<8x512xf32>
    %7 = arith.select %2, %5, %6 : vector<8x512xi1>, vector<8x512xf32>
    %c0_4 = arith.constant 0 : index
    %c0_5 = arith.constant 0 : index
    %8 = vector.load %arg4[%c0_4, %c0_5] : memref<8x512xf32, #tpu.memory_space<vmem>>, vector<8x512xf32>
    tpu.vector_store %arg4[%c0_4, %c0_5], %7 {strides = array<i32>} : memref<8x512xf32, #tpu.memory_space<vmem>>, vector<8x512xf32>,
    %c0_6 = arith.constant 0 : index
    %c0_7 = arith.constant 0 : index
    %9 = vector.load %arg2[%c0_6, %c0_7] : memref<8x512xf32, #tpu.memory_space<vmem>>, vector<8x512xf32>
    %cst_8 = arith.constant 1.33333337 : f32
    %10 = vector.broadcast %cst_8 : f32 to vector<8x512xf32>
    %11 = arith.mulf %9, %10 : vector<8x512xf32>
    %cst_9 = arith.constant 0.000000e+00 : f32
    %12 = vector.broadcast %cst_9 : f32 to vector<8x512xf32>
    %13 = arith.select %2, %11, %12 : vector<8x512xi1>, vector<8x512xf32>
    %c0_10 = arith.constant 0 : index
    %c0_11 = arith.constant 0 : index
    %14 = vector.load %arg5[%c0_10, %c0_11] : memref<8x512xf32, #tpu.memory_space<vmem>>, vector<8x512xf32>
    tpu.vector_store %arg5[%c0_10, %c0_11], %13 {strides = array<i32>} : memref<8x512xf32, #tpu.memory_space<vmem>>, vector<8x512xf32>,
    return
  }
  func.func @transform_0(%arg0: i32) -> (i32, i32) {
    %c0_i32 = arith.constant 0 : i32
    %c0_i32_0 = arith.constant 0 : i32
    return %arg0, %c0_i32 : i32, i32
  }
  func.func @transform_1(%arg0: i32) -> (i32, i32) {
    %c0_i32 = arith.constant 0 : i32
    %c0_i32_0 = arith.constant 0 : i32
    return %arg0, %c0_i32 : i32, i32
  }
  func.func @transform_2(%arg0: i32) -> (i32, i32) {
    %c0_i32 = arith.constant 0 : i32
    %c0_i32_0 = arith.constant 0 : i32
    return %arg0, %c0_i32 : i32, i32
  }
  func.func @transform_3(%arg0: i32) -> (i32, i32) {
    %c0_i32 = arith.constant 0 : i32
    %c0_i32_0 = arith.constant 0 : i32
    return %arg0, %c0_i32 : i32, i32
  }
  func.func @transform_4(%arg0: i32) -> (i32, i32) {
    %c0_i32 = arith.constant 0 : i32
    %c0_i32_0 = arith.constant 0 : i32
    return %arg0, %c0_i32 : i32, i32
  }
}

</mosaic_0001>

<llo_original>
// kernel: tpu_custom_call.1
$region0: #{tpu_custom_call.1}
  #allocation0 [shape = 'u32[]', space=smem, size = 0x4, offset = 0x4, fixed_abs, tag = 'smem constant byte address 0x4 - core index']
  #allocation1 [shape = 'u32[144,128]{1,0:T(1,128)}', space=vmem, size = 0x12000, scoped, tag = 'internal scratch']
  %s0 = inlined_call_operand.hbm [shape: f32[8,512], index: 0, kind: input, shape index: {}]
  %s1 = inlined_call_operand.hbm [shape: f32[8,512], index: 1, kind: input, shape index: {}]
  %s2 = inlined_call_operand.hbm [shape: s32[8,512], index: 2, kind: input, shape index: {}]
  %s3 = inlined_call_operand.hbm [shape: f32[8,512], index: 3, kind: output, shape index: {0}]
  %s4 = inlined_call_operand.hbm [shape: f32[8,512], index: 4, kind: output, shape index: {1}]
  %5 = xla_tuple %s3, %s4
  %s6 = sld [smem:[#allocation0]]
  $region42: #{tpu_custom_call.1} parent=0
    _
  %s8 = ssub.s32 1, %s6
  %s9 = scalar_select 0, %s8, %s6
  $region1: #{tpu_custom_call.1} parent=0
    #allocation2 [shape = 'u8[16384]{0}', space=vmem, size = 0x4000, scoped, tag = 'input window, operand 0, single buffered']
    #allocation3 [shape = 's32[1]{0}', space=sflag, size = 0x4, scoped, tag = 'scoped memory for tpu_custom_call.1']
    #allocation4 [shape = 's32[1]{0}', space=sflag, size = 0x4, scoped, tag = 'scoped memory for tpu_custom_call.1']
    #allocation5 [shape = 'u8[16384]{0}', space=vmem, size = 0x4000, scoped, tag = 'input window, operand 1, single buffered']
    #allocation6 [shape = 's32[1]{0}', space=sflag, size = 0x4, scoped, tag = 'scoped memory for tpu_custom_call.1']
    #allocation7 [shape = 'u8[16384]{0}', space=vmem, size = 0x4000, scoped, tag = 'input window, operand 2, single buffered']
    #allocation8 [shape = 'u8[16384]{0}', space=vmem, size = 0x4000, scoped, tag = 'output window, operand 0, single buffered']
    #allocation9 [shape = 'u8[16384]{0}', space=vmem, size = 0x4000, scoped, tag = 'output window, operand 1, single buffered']
    #allocation10 [shape = 's32[1]{0}', space=sflag, size = 0x4, scoped, tag = 'scoped memory for tpu_custom_call.1']
    %10 = vsyncpa [#allocation3], 0
    %11 = vsyncpa [#allocation6], 0
    %12 = vsyncpa [#allocation4], 0
    %13 = vsyncpa [#allocation10], 0
    // Predicated region
    $region2: #{tpu_custom_call.1} parent=1 // pred_check
      _
    $region3: #{tpu_custom_call.1} parent=1 // pred_check_branch
      %15 = sbr.rel (0) target = $region5
    $region4: #{tpu_custom_call.1} parent=1 // pred_region
      %s17 = ssub.s32 512, 512
      %18 = vsyncadd [#allocation3], %s17
      %s20 = sshll.u32 [#allocation2], 4
      %s21 = int_to_ptr.vmem [resolvable:$true] %s20
      %23 = dma.hbm_to_vmem [thread:$0]  %s0, 512, %s21, [#allocation3]
    $region5: #{tpu_custom_call.1} parent=1 // pred_fallthru
      _
    // Predicated region
    $region6: #{tpu_custom_call.1} parent=1 // pred_check
      _
    $region7: #{tpu_custom_call.1} parent=1 // pred_check_branch
      %25 = sbr.rel (0) target = $region9
    $region8: #{tpu_custom_call.1} parent=1 // pred_region
      %s27 = ssub.s32 512, 512
      %28 = vsyncadd [#allocation6], %s27
      %s30 = sshll.u32 [#allocation5], 4
      %s31 = int_to_ptr.vmem [resolvable:$true] %s30
      %33 = dma.hbm_to_vmem [thread:$0]  %s1, 512, %s31, [#allocation6]
    $region9: #{tpu_custom_call.1} parent=1 // pred_fallthru
      _
    // Predicated region
    $region10: #{tpu_custom_call.1} parent=1 // pred_check
      _
    $region11: #{tpu_custom_call.1} parent=1 // pred_check_branch
      %35 = sbr.rel (0) target = $region13
    $region12: #{tpu_custom_call.1} parent=1 // pred_region
      %s37 = ssub.s32 512, 512
      %38 = vsyncadd [#allocation6], %s37
      %s40 = sshll.u32 [#allocation7], 4
      %s41 = int_to_ptr.vmem [resolvable:$true] %s40
      %43 = dma.hbm_to_vmem [thread:$0]  %s2, 512, %s41, [#allocation6]
    $region13: #{tpu_custom_call.1} parent=1 // pred_fallthru
      _
    // Predicated region
    $region14: #{tpu_custom_call.1} parent=1 // pred_check
      _
    $region15: #{tpu_custom_call.1} parent=1 // pred_check_branch
      %45 = sbr.rel (0) target = $region17
    $region16: #{tpu_custom_call.1} parent=1 // pred_region
      %46 = dma.done [#allocation3], 512
    $region17: #{tpu_custom_call.1} parent=1 // pred_fallthru
      _
    // Predicated region
    $region18: #{tpu_custom_call.1} parent=1 // pred_check
      _
    $region19: #{tpu_custom_call.1} parent=1 // pred_check_branch
      %48 = sbr.rel (0) target = $region21
    $region20: #{tpu_custom_call.1} parent=1 // pred_region
      %49 = dma.done [#allocation6], 512
    $region21: #{tpu_custom_call.1} parent=1 // pred_fallthru
      _
    // Predicated region
    $region22: #{tpu_custom_call.1} parent=1 // pred_check
      _
    $region23: #{tpu_custom_call.1} parent=1 // pred_check_branch
      %51 = sbr.rel (0) target = $region25
    $region24: #{tpu_custom_call.1} parent=1 // pred_region
      %52 = dma.done [#allocation6], 512
    $region25: #{tpu_custom_call.1} parent=1 // pred_fallthru
      _
    %v53 = vld [vmem:[#allocation7] sm:$0xff]
    %v54 = vld [vmem:[#allocation7 + $0x8] sm:$0xff]
    %v55 = vld [vmem:[#allocation7 + $0x10] sm:$0xff]
    %v56 = vld [vmem:[#allocation7 + $0x18] sm:$0xff]
    %vm57 = vcmp.lt.s32.totalorder %v53, 1073741824
    %vm58 = vcmp.lt.s32.totalorder %v54, 1073741824
    %vm59 = vcmp.lt.s32.totalorder %v55, 1073741824
    %vm60 = vcmp.lt.s32.totalorder %v56, 1073741824
    %v61 = vld [vmem:[#allocation2] sm:$0xff]
    %v62 = vld [vmem:[#allocation2 + $0x8] sm:$0xff]
    %v63 = vld [vmem:[#allocation2 + $0x10] sm:$0xff]
    %v64 = vld [vmem:[#allocation2 + $0x18] sm:$0xff]
    %v65 = vmul.f32 %v61, 1.3333334
    %v66 = vmul.f32 %v62, 1.3333334
    %v67 = vmul.f32 %v63, 1.3333334
    %v68 = vmul.f32 %v64, 1.3333334
    %v69 = vsel %vm57, %v65, 0.0
    %v70 = vsel %vm58, %v66, 0.0
    %v71 = vsel %vm59, %v67, 0.0
    %v72 = vsel %vm60, %v68, 0.0
    %73 = vst [vmem:[#allocation8] sm:$0xff] %v69
    %74 = vst [vmem:[#allocation8 + $0x8] sm:$0xff] %v70
    %75 = vst [vmem:[#allocation8 + $0x10] sm:$0xff] %v71
    %76 = vst [vmem:[#allocation8 + $0x18] sm:$0xff] %v72
    %v77 = vld [vmem:[#allocation5] sm:$0xff]
    %v78 = vld [vmem:[#allocation5 + $0x8] sm:$0xff]
    %v79 = vld [vmem:[#allocation5 + $0x10] sm:$0xff]
    %v80 = vld [vmem:[#allocation5 + $0x18] sm:$0xff]
    %v81 = vmul.f32 %v77, 1.3333334
    %v82 = vmul.f32 %v78, 1.3333334
    %v83 = vmul.f32 %v79, 1.3333334
    %v84 = vmul.f32 %v80, 1.3333334
    %v85 = vsel %vm57, %v81, 0.0
    %v86 = vsel %vm58, %v82, 0.0
    %v87 = vsel %vm59, %v83, 0.0
    %v88 = vsel %vm60, %v84, 0.0
    %89 = vst [vmem:[#allocation9] sm:$0xff] %v85
    %90 = vst [vmem:[#allocation9 + $0x8] sm:$0xff] %v86
    %91 = vst [vmem:[#allocation9 + $0x10] sm:$0xff] %v87
    %92 = vst [vmem:[#allocation9 + $0x18] sm:$0xff] %v88
    // Predicated region
    $region26: #{tpu_custom_call.1} parent=1 // pred_check
      _
    $region27: #{tpu_custom_call.1} parent=1 // pred_check_branch
      %94 = sbr.rel (0) target = $region29
    $region28: #{tpu_custom_call.1} parent=1 // pred_region
      %s96 = ssub.s32 512, 512
      %97 = vsyncadd [#allocation4], %s96
      %s99 = sshll.u32 [#allocation8], 4
      %s100 = int_to_ptr.vmem [resolvable:$true] %s99
      %102 = dma.vmem_to_hbm [thread:$0]  %s100, 512, %s3, [#allocation4]
    $region29: #{tpu_custom_call.1} parent=1 // pred_fallthru
      _
    // Predicated region
    $region30: #{tpu_custom_call.1} parent=1 // pred_check
      _
    $region31: #{tpu_custom_call.1} parent=1 // pred_check_branch
      %104 = sbr.rel (0) target = $region33
    $region32: #{tpu_custom_call.1} parent=1 // pred_region
      %s106 = ssub.s32 512, 512
      %107 = vsyncadd [#allocation10], %s106
      %s109 = sshll.u32 [#allocation9], 4
      %s110 = int_to_ptr.vmem [resolvable:$true] %s109
      %112 = dma.vmem_to_hbm [thread:$0]  %s110, 512, %s4, [#allocation10]
    $region33: #{tpu_custom_call.1} parent=1 // pred_fallthru
      _
    // Predicated region
    $region34: #{tpu_custom_call.1} parent=1 // pred_check
      _
    $region35: #{tpu_custom_call.1} parent=1 // pred_check_branch
      %114 = sbr.rel (0) target = $region37
    $region36: #{tpu_custom_call.1} parent=1 // pred_region
      %115 = dma.done [#allocation4], 512
    $region37: #{tpu_custom_call.1} parent=1 // pred_fallthru
      _
    // Predicated region
    $region38: #{tpu_custom_call.1} parent=1 // pred_check
      _
    $region39: #{tpu_custom_call.1} parent=1 // pred_check_branch
      %117 = sbr.rel (0) target = $region41
    $region40: #{tpu_custom_call.1} parent=1 // pred_region
      %118 = dma.done [#allocation10], 512
    $region41: #{tpu_custom_call.1} parent=1 // pred_fallthru
      _
    %119 = vsyncpa [#allocation3], 1
    %120 = vsyncpa [#allocation6], 1
    %121 = vsyncpa [#allocation4], 1
    %122 = vsyncpa [#allocation10], 1

</llo_original>
